<compile_context>
chip_gen: v6e
topology: v6e:2x2x1
jax: 0.10.0
libtpu: 0.0.40
codegen_flags: <defaults>
</compile_context>

<pallas_src>
import jax
import jax.numpy as jnp
from jax.experimental import pallas as pl
from jax.experimental.pallas import tpu as pltpu

LEAKY_RATE = 0.1


def _round_up(x, m):
    return (x + m - 1) // m * m


# -----------------------------------------------------------------------------
# Pallas kernel: s = LeakyReLU(max_over_Cout(W @ X + b)) for one lane tile.
# -----------------------------------------------------------------------------
def _conv_max_kernel(x_ref, w_ref, b_ref, o_ref):
    # x_ref: (C_in_pad, L_TILE) bf16   w_ref: (C_out, C_in_pad) bf16
    # b_ref: (C_out, 1) f32            o_ref: (1, L_TILE)       f32
    y = jnp.dot(w_ref[...], x_ref[...], preferred_element_type=jnp.float32)
    y = y + b_ref[...]                              # per-channel bias (f32)
    s = jnp.max(y, axis=0, keepdims=True)           # channel max (sublane/XLU)
    o_ref[...] = jnp.maximum(s, LEAKY_RATE * s)     # LeakyReLU after max (exact)


def conv_leakyrelu_channelmax(x_bcnk, weight, bias):
    """Pointwise conv (C_in -> C_out) + bias + LeakyReLU(0.1), then max over
    the output-channel dim -- fused in one Pallas kernel.

    x_bcnk: (B, C_in, N, K) f32
    weight: (C_out, C_in)   f32
    bias:   (C_out,)        f32
    returns scores (B, N, K) f32
    """
    B, C_in, N, K = x_bcnk.shape
    C_out = weight.shape[0]
    cols = B * N * K

    # ---- layout plumbing (plain JAX): lane-dense 2-D operands ---------------
    x2d = jnp.transpose(x_bcnk, (1, 0, 2, 3)).reshape(C_in, cols)

    # pad contraction dim to a sublane multiple of 8 (zero rows are exact)
    c_pad = _round_up(C_in, 8)
    # lane tile: multiple of 128, big enough to amortize grid-step overhead,
    # small enough to double-buffer inside v7x's 32 MiB scoped VMEM, and
    # giving >=2 grid steps where possible (2 TCs per chip on v7x).
    cols_128 = _round_up(cols, 128)
    if cols_128 >= 4096:
        l_tile = 2048
    elif cols_128 >= 1024:
        l_tile = 512
    else:
        l_tile = 128
    n_tiles = pl.cdiv(cols, l_tile)
    cols_full = n_tiles * l_tile

    x2d = jnp.pad(x2d, ((0, c_pad - C_in), (0, cols_full - cols)))
    w2d = jnp.pad(weight, ((0, 0), (0, c_pad - C_in)))

    # bf16 operands for the MXU / halved HBM traffic on X; f32 everywhere else.
    x_bf = x2d.astype(jnp.bfloat16)
    w_bf = w2d.astype(jnp.bfloat16)
    b2d = bias.reshape(C_out, 1).astype(jnp.float32)

    scores2d = pl.pallas_call(
        _conv_max_kernel,
        out_shape=jax.ShapeDtypeStruct((1, cols_full), jnp.float32),
        grid_spec=pltpu.PrefetchScalarGridSpec(
            num_scalar_prefetch=0,
            grid=(n_tiles,),
            in_specs=[
                pl.BlockSpec((c_pad, l_tile), lambda j: (0, j)),
                pl.BlockSpec((C_out, c_pad), lambda j: (0, 0)),
                pl.BlockSpec((C_out, 1), lambda j: (0, 0)),
            ],
            out_specs=pl.BlockSpec((1, l_tile), lambda j: (0, j)),
        ),
        compiler_params=pltpu.CompilerParams(
            dimension_semantics=("parallel",),
            vmem_limit_bytes=32 * 1024 * 1024,
        ),
    )(x_bf, w_bf, b2d)

    return scores2d[0, :cols].reshape(B, N, K)


def reference_conv_leakyrelu_channelmax(x_bcnk, weight, bias):
    """Plain-JAX version of the same numeric recipe (bf16 operands, f32 acc)."""
    y = jnp.einsum(
        "oc,bcnk->bonk",
        weight.astype(jnp.bfloat16),
        x_bcnk.astype(jnp.bfloat16),
        preferred_element_type=jnp.float32,
    )
    y = y + bias[None, :, None, None]
    y = jnp.maximum(y, LEAKY_RATE * y)               # conv + LeakyReLU
    return jnp.max(y, axis=1)                        # channel max -> (B, N, K)


# -----------------------------------------------------------------------------
# PointsFusion2 forward (plain-JAX glue around the Pallas kernel)
# -----------------------------------------------------------------------------
def knn_group(points1, points2, k):
    """For each point in points1 (query), take the k nearest points in points2.

    points1: (B, 3, N)   points2: (B, 3, M)
    returns new_features (B, 4, N, k), nn (B, 3, N, k)
    """
    q = jnp.transpose(points1, (0, 2, 1))                   # (B, N, 3)
    d = jnp.transpose(points2, (0, 2, 1))                   # (B, M, 3)
    # TODO(synk): kNN (pairwise distances + top-k + gather) stays in plain JAX;
    # data-dependent top-k/gather has no clean Pallas TPU equivalent at this size.
    dist2 = (
        jnp.sum(q * q, axis=-1, keepdims=True)
        + jnp.sum(d * d, axis=-1)[:, None, :]
        - 2.0 * jnp.einsum("bnc,bmc->bnm", q, d)
    )
    _, idx = jax.lax.top_k(-dist2, k)                       # (B, N, k)
    nn = jax.vmap(lambda db, ix: db[ix])(d, idx)            # (B, N, k, 3)
    resi = nn - q[:, :, None, :]
    gdist = jnp.linalg.norm(resi, axis=-1, keepdims=True)
    feats = jnp.concatenate([resi, gdist], axis=-1)         # (B, N, k, 4)
    return jnp.transpose(feats, (0, 3, 1, 2)), jnp.transpose(nn, (0, 3, 1, 2))


def points_fusion2_forward(points1, points2, pc, k, t, weight, bias, key, *,
                           score_fn):
    """JAX port of PointsFusion2.forward (batch loop unrolled; deterministic
    permutation keys replace torch.randperm)."""
    B, _, N = points1.shape
    N2 = int(N * t)
    N1 = N - N2
    k2 = int(k * t)
    k1 = k - k2

    feats_list, grouped_list = [], []
    for i in range(B):
        p1 = points1[i:i + 1]
        p2 = points2[i:i + 1]
        p3 = pc[i:i + 1]
        key, s1, s2 = jax.random.split(key, 3)
        ridx1 = jax.random.permutation(s1, N)[:N1]
        ridx2 = jax.random.permutation(s2, N)[:N2]
        new_points = jnp.concatenate(
            [p1[:, :, ridx1], p2[:, :, ridx2]], axis=-1)    # (1, 3, N)
        f1, g1 = knn_group(new_points, p1, k1)
        f2, g2 = knn_group(new_points, p2, k2)
        f3, g3 = knn_group(new_points, p3, k)
        feats_list.append(jnp.concatenate([f1, f2, f3], axis=-1))
        grouped_list.append(jnp.concatenate([g1, g2, g3], axis=-1))

    new_features = jnp.concatenate(feats_list, axis=0)      # (B, 4, N, k1+k2+k)
    new_grouped = jnp.concatenate(grouped_list, axis=0)     # (B, 3, N, k1+k2+k)

    # TODO(synk): the SelfAttention submodule is not defined in the provided
    # source; stood in with a pointwise (4 -> C_out) conv + LeakyReLU(0.1).
    # Conv + channel-max are fused in the Pallas kernel -> (B, N, K) scores.
    scores = score_fn(new_features, weight, bias)           # (B, N, K)

    w_sm = jax.nn.softmax(scores, axis=-1)                  # (B, N, K)
    fused = jnp.einsum("bnk,bcnk->bcn", w_sm, new_grouped)
    return fused                                            # (B, 3, N)


def init_conv_params(key, in_channels, out_channels):
    kw, kb = jax.random.split(key)
    bound = 1.0 / (in_channels ** 0.5)
    weight = jax.random.uniform(kw, (out_channels, in_channels),
                                minval=-bound, maxval=bound, dtype=jnp.float32)
    bias = jax.random.uniform(kb, (out_channels,),
                              minval=-bound, maxval=bound, dtype=jnp.float32)
    return weight, bias


if __name__ == "__main__":
    root = jax.random.PRNGKey(0)
    k_p1, k_p2, k_pc, k_w, k_perm = jax.random.split(root, 5)

    B, N = 2, 16
    k_nn, t = 4, 0.5
    in_channels, out_channels = 4, 32

    points1 = jax.random.normal(k_p1, (B, 3, N), dtype=jnp.float32)
    points2 = jax.random.normal(k_p2, (B, 3, N), dtype=jnp.float32)
    pc = jax.random.normal(k_pc, (B, 3, N), dtype=jnp.float32)
    weight, bias = init_conv_params(k_w, in_channels, out_channels)

    fused = points_fusion2_forward(
        points1, points2, pc, k_nn, t, weight, bias, k_perm,
        score_fn=conv_leakyrelu_channelmax)
    fused = jax.block_until_ready(fused)

    ref = points_fusion2_forward(
        points1, points2, pc, k_nn, t, weight, bias, k_perm,
        score_fn=reference_conv_leakyrelu_channelmax)
    ref = jax.block_until_ready(ref)

    assert fused.shape == (B, 3, N)
    assert jnp.allclose(fused, ref, atol=1e-3, rtol=1e-3), (
        float(jnp.max(jnp.abs(fused - ref))))

    print("KERNEL_OK")
</pallas_src>

<mosaic_0001>
module attributes {stable_mosaic.version = 11 : i64} {
  func.func @_conv_max_kernel(%arg0: i32, %arg1: memref<8x128xbf16, #tpu.memory_space<vmem>>, %arg2: memref<32x8xbf16, #tpu.memory_space<vmem>>, %arg3: memref<32x1xf32, #tpu.memory_space<vmem>>, %arg4: memref<1x128xf32, #tpu.memory_space<vmem>>) attributes {dimension_semantics = [#tpu.dimension_semantics<parallel>], iteration_bounds = array<i64: 2>, scalar_prefetch = 0 : i64, scratch_operands = 0 : i64, tpu.core_type = #tpu.core_type<tc>, window_params = [{transform_indices = @transform_0, window_bounds = array<i64: 8, 128>}, {pipeline_mode = #tpu.pipeline_mode<synchronous>, transform_indices = @transform_1, window_bounds = array<i64: 32, 8>}, {pipeline_mode = #tpu.pipeline_mode<synchronous>, transform_indices = @transform_2, window_bounds = array<i64: 32, 1>}, {transform_indices = @transform_3, window_bounds = array<i64: 1, 128>}]} {
    %c0 = arith.constant 0 : index
    %c0_0 = arith.constant 0 : index
    %0 = vector.load %arg2[%c0, %c0_0] : memref<32x8xbf16, #tpu.memory_space<vmem>>, vector<32x8xbf16>
    %c0_1 = arith.constant 0 : index
    %c0_2 = arith.constant 0 : index
    %1 = vector.load %arg1[%c0_1, %c0_2] : memref<8x128xbf16, #tpu.memory_space<vmem>>, vector<8x128xbf16>
    %cst = arith.constant dense<0.000000e+00> : vector<32x128xf32>
    %2 = tpu.matmul %0, %1, %cst {dimension_numbers = #tpu.dot_dimension_numbers<[1], [0], [0], [1], [0, 0, 1, 1], [], []>} : vector<32x8xbf16>, vector<8x128xbf16>, vector<32x128xf32> -> vector<32x128xf32>
    %c0_3 = arith.constant 0 : index
    %c0_4 = arith.constant 0 : index
    %3 = vector.load %arg3[%c0_3, %c0_4] : memref<32x1xf32, #tpu.memory_space<vmem>>, vector<32x1xf32>
    %4 = vector.broadcast %3 : vector<32x1xf32> to vector<32x128xf32>
    %5 = arith.addf %2, %4 : vector<32x128xf32>
    %cst_5 = arith.constant dense<0xFF800000> : vector<128xf32>
    %6 = vector.multi_reduction <maximumf>, %5, %cst_5 [0] : vector<32x128xf32> to vector<128xf32>
    %7 = vector.shape_cast %6 : vector<128xf32> to vector<1x128xf32>
    %cst_6 = arith.constant 1.000000e-01 : f32
    %8 = vector.broadcast %cst_6 : f32 to vector<1x128xf32>
    %9 = arith.mulf %8, %7 : vector<1x128xf32>
    %10 = arith.maximumf %7, %9 : vector<1x128xf32>
    %c0_7 = arith.constant 0 : index
    %c0_8 = arith.constant 0 : index
    %11 = vector.load %arg4[%c0_7, %c0_8] : memref<1x128xf32, #tpu.memory_space<vmem>>, vector<1x128xf32>
    tpu.vector_store %arg4[%c0_7, %c0_8], %10 {strides = array<i32>} : memref<1x128xf32, #tpu.memory_space<vmem>>, vector<1x128xf32>,
    return
  }
  func.func @transform_0(%arg0: i32) -> (i32, i32) {
    %c0_i32 = arith.constant 0 : i32
    %c0_i32_0 = arith.constant 0 : i32
    return %c0_i32, %arg0 : i32, i32
  }
  func.func @transform_1(%arg0: i32) -> (i32, i32) {
    %c0_i32 = arith.constant 0 : i32
    %c0_i32_0 = arith.constant 0 : i32
    %c0_i32_1 = arith.constant 0 : i32
    return %c0_i32, %c0_i32_0 : i32, i32
  }
  func.func @transform_2(%arg0: i32) -> (i32, i32) {
    %c0_i32 = arith.constant 0 : i32
    %c0_i32_0 = arith.constant 0 : i32
    %c0_i32_1 = arith.constant 0 : i32
    return %c0_i32, %c0_i32_0 : i32, i32
  }
  func.func @transform_3(%arg0: i32) -> (i32, i32) {
    %c0_i32 = arith.constant 0 : i32
    %c0_i32_0 = arith.constant 0 : i32
    return %c0_i32, %arg0 : i32, i32
  }
}

</mosaic_0001>

<llo_original>
// kernel: tpu_custom_call.1
$region0: #{tpu_custom_call.1}
  #allocation0 [shape = 'u32[]', space=smem, size = 0x4, offset = 0x4, fixed_abs, tag = 'smem constant byte address 0x4 - core index']
  #allocation1 [shape = 'u32[144,128]{1,0:T(1,128)}', space=vmem, size = 0x12000, scoped, tag = 'internal scratch']
  %s0 = inlined_call_operand.vmem [shape: bf16[8,256], index: 0, kind: input, shape index: {}]
  %s1 = inlined_call_operand.vmem [shape: bf16[32,8], index: 1, kind: input, shape index: {}]
  %s2 = inlined_call_operand.vmem [shape: f32[32,1], index: 2, kind: input, shape index: {}]
  %s3 = inlined_call_operand.hbm [shape: f32[1,256], index: 3, kind: output, shape index: {}]
  %s4 = sld [smem:[#allocation0]]
  $region45: #{tpu_custom_call.1} parent=0
    _
  %s6 = ssub.s32 1, %s4
  %s7 = scalar_select 0, %s6, %s4
  $region1: #{tpu_custom_call.1} parent=0
    #allocation2 [shape = 'u8[1024]{0}', space=vmem, size = 0x400, scoped, tag = 'output window, operand 0']
    #allocation3 [shape = 's32[2]{0}', space=sflag, size = 0x8, scoped, tag = 'scoped memory for tpu_custom_call.1']
    %8 = vsyncpa [#allocation3], 0
    %s9 = scalar_lea.sflag [#allocation3], 1
    %10 = vsyncpa %s9, 0
    loop: start=0, step=1, limit=4
    $region2: #{tpu_custom_call.1} parent=1 // loop_pre_header
      _
    $region3: #{tpu_custom_call.1} parent=1 // loop_header
      %s12 = sphi 0, %s16
      %p13 = scmp.ge.s32.totalorder %s12, 4
      %s22 = sphi 0, %s24
      %s25 = sphi 0, %s22
      %s26 = sphi 0, %s25
      %s42 = sphi 0, %s26
      %s46 = sphi 0, %s46
      %s48 = sphi 0, %s46
      %s49 = sphi 0, %s48
      %s63 = sphi 0, %s49
      %s67 = sphi 0, %s67
      %s69 = sphi 0, %s67
      %s70 = sphi 0, %s69
      %s84 = sphi 0, %s70
      %s90 = sphi 0, %s92
      %s93 = sphi 0, %s90
      %s94 = sphi 0, %s93
      %s110 = sphi 0, %s94
    $region4: #{tpu_custom_call.1} parent=1 // loop_header_branch
      %15 = sbr.rel (%p13) target = $region8
    $region5: #{tpu_custom_call.1} parent=1 // loop_body
      %s17 = ssub.s32 %s12, 1
      %s18 = ssub.s32 %s12, 2
      %s19 = sadd.s32 %s12, 1
      %s20 = ssub.s32 %s12, %s19
      %p21 = scmp.eq.s32.totalorder %s20, 0
      %s23 = sadd.s32 %s22, 1
      %s24 = scalar_select %p21, %s22, %s23
      %p27 = pneg %p21
      %p28 = scmp.eq.s32.totalorder %s12, 1
      %p29 = por %p27, %p28
      %p30 = scmp.ne.s32.totalorder %s22, %s25
      %p31 = scmp.eq.s32.totalorder %s12, 0
      %p32 = por %p30, %p31
      %p33 = scmp.ne.s32.totalorder %s22, %s25
      %p34 = scmp.eq.s32.totalorder %s17, 1
      %p35 = por %p33, %p34
      %p36 = scmp.ne.s32.totalorder %s25, %s26
      %p37 = scmp.eq.s32.totalorder %s17, 0
      %p38 = por %p36, %p37
      %p39 = scmp.ne.s32.totalorder %s25, %s26
      %p40 = scmp.eq.s32.totalorder %s18, 1
      %p41 = por %p39, %p40
      %p43 = scmp.ne.s32.totalorder %s26, %s42
      %p44 = scmp.eq.s32.totalorder %s18, 0
      %p45 = por %p43, %p44
      %s47 = sadd.s32 %s46, 1
      %p50 = scmp.eq.s32.totalorder %s12, 1
      %p51 = scmp.ne.s32.totalorder %s46, %s48
      %p52 = scmp.eq.s32.totalorder %s12, 0
      %p53 = por %p51, %p52
      %p54 = scmp.ne.s32.totalorder %s46, %s48
      %p55 = scmp.eq.s32.totalorder %s17, 1
      %p56 = por %p54, %p55
      %p57 = scmp.ne.s32.totalorder %s48, %s49
      %p58 = scmp.eq.s32.totalorder %s17, 0
      %p59 = por %p57, %p58
      %p60 = scmp.ne.s32.totalorder %s48, %s49
      %p61 = scmp.eq.s32.totalorder %s18, 1
      %p62 = por %p60, %p61
      %p64 = scmp.ne.s32.totalorder %s49, %s63
      %p65 = scmp.eq.s32.totalorder %s18, 0
      %p66 = por %p64, %p65
      %s68 = sadd.s32 %s67, 1
      %p71 = scmp.eq.s32.totalorder %s12, 1
      %p72 = scmp.ne.s32.totalorder %s67, %s69
      %p73 = scmp.eq.s32.totalorder %s12, 0
      %p74 = por %p72, %p73
      %p75 = scmp.ne.s32.totalorder %s67, %s69
      %p76 = scmp.eq.s32.totalorder %s17, 1
      %p77 = por %p75, %p76
      %p78 = scmp.ne.s32.totalorder %s69, %s70
      %p79 = scmp.eq.s32.totalorder %s17, 0
      %p80 = por %p78, %p79
      %p81 = scmp.ne.s32.totalorder %s69, %s70
      %p82 = scmp.eq.s32.totalorder %s18, 1
      %p83 = por %p81, %p82
      %p85 = scmp.ne.s32.totalorder %s70, %s84
      %p86 = scmp.eq.s32.totalorder %s18, 0
      %p87 = por %p85, %p86
      %s88 = ssub.s32 %s12, %s19
      %p89 = scmp.eq.s32.totalorder %s88, 0
      %s91 = sadd.s32 %s90, 1
      %s92 = scalar_select %p89, %s90, %s91
      %p95 = pneg %p89
      %p96 = scmp.eq.s32.totalorder %s12, 1
      %p97 = por %p95, %p96
      %p98 = scmp.ne.s32.totalorder %s90, %s93
      %p99 = scmp.eq.s32.totalorder %s12, 0
      %p100 = por %p98, %p99
      %p101 = scmp.ne.s32.totalorder %s90, %s93
      %p102 = scmp.eq.s32.totalorder %s17, 1
      %p103 = por %p101, %p102
      %p104 = scmp.ne.s32.totalorder %s93, %s94
      %p105 = scmp.eq.s32.totalorder %s17, 0
      %p106 = por %p104, %p105
      %p107 = scmp.ne.s32.totalorder %s93, %s94
      %p108 = scmp.eq.s32.totalorder %s18, 1
      %p109 = por %p107, %p108
      %p111 = scmp.ne.s32.totalorder %s94, %s110
      %p112 = scmp.eq.s32.totalorder %s18, 0
      %p113 = por %p111, %p112
      %p114 = scmp.le.s32.totalorder 1, %s12
      %p115 = scmp.lt.s32.totalorder %s12, 3
      %p116 = pnand %p114, %p115
      %p117 = pneg %p116
      // Predicated region
      $region9: #{tpu_custom_call.1} parent=5 // pred_check
        _
      $region10: #{tpu_custom_call.1} parent=5 // pred_check_branch
        %119 = sbr.rel (%p116) target = $region12
      $region11: #{tpu_custom_call.1} parent=5 // pred_region
        %s120 = ssub.s32 %s12, 1
        // Predicated region
        $region13: #{tpu_custom_call.1} parent=11 // pred_check
          %p121 = pneg %p59
        $region14: #{tpu_custom_call.1} parent=11 // pred_check_branch
          %123 = sbr.rel (%p121) target = $region16
        $region15: #{tpu_custom_call.1} parent=11 // pred_region
          _
        $region16: #{tpu_custom_call.1} parent=11 // pred_fallthru
          _
        // Predicated region
        $region17: #{tpu_custom_call.1} parent=11 // pred_check
          %p124 = pneg %p80
        $region18: #{tpu_custom_call.1} parent=11 // pred_check_branch
          %126 = sbr.rel (%p124) target = $region20
        $region19: #{tpu_custom_call.1} parent=11 // pred_region
          _
        $region20: #{tpu_custom_call.1} parent=11 // pred_fallthru
          _
      $region12: #{tpu_custom_call.1} parent=5 // pred_fallthru
        _
      %p127 = scmp.lt.s32.totalorder %s12, 2
      // Predicated region
      $region21: #{tpu_custom_call.1} parent=5 // pred_check
        %p128 = pneg %p127
      $region22: #{tpu_custom_call.1} parent=5 // pred_check_branch
        %130 = sbr.rel (%p128) target = $region24
      $region23: #{tpu_custom_call.1} parent=5 // pred_region
        // Predicated region
        $region25: #{tpu_custom_call.1} parent=23 // pred_check
          %p131 = pneg %p32
        $region26: #{tpu_custom_call.1} parent=23 // pred_check_branch
          %133 = sbr.rel (%p131) target = $region28
        $region27: #{tpu_custom_call.1} parent=23 // pred_region
          %p134 = scmp.lt.s32.totalorder %s12, 1
          %s135 = scalar_select %p134, %s12, 1
          %s136 = smul.addr %s135, 4
          %s137 = scalar_lea.vmem %s0, %s136
        $region28: #{tpu_custom_call.1} parent=23 // pred_fallthru
          _
      $region24: #{tpu_custom_call.1} parent=5 // pred_fallthru
        _
      %p138 = scmp.le.s32.totalorder 1, %s12
      %p139 = scmp.lt.s32.totalorder %s12, 3
      %p140 = pnand %p138, %p139
      %p141 = pneg %p140
      // Predicated region
      $region29: #{tpu_custom_call.1} parent=5 // pred_check
        _
      $region30: #{tpu_custom_call.1} parent=5 // pred_check_branch
        %143 = sbr.rel (%p140) target = $region32
      $region31: #{tpu_custom_call.1} parent=5 // pred_region
        %s144 = ssub.s32 %s12, 1
        %p145 = scmp.lt.s32.totalorder %s17, 1
        %s146 = scalar_select %p145, %s17, 1
        %s147 = smul.addr %s146, 4
        %s148 = scalar_lea.vmem %s0, %s147
        %p149 = pneg %p38
        %p150 = pneg %p35
        %p151 = pneg %p59
        %p152 = pneg %p56
        %p153 = pneg %p80
        %p154 = pneg %p77
        %p155 = pneg %p106
        %p156 = pneg %p103
        %s157 = sand.u32 %s93, 1
        %s158 = scalar_lea.sflag [#allocation3], %s157
        %s159 = sand.u32 %s93, 1
        %s160 = scalar_lea.vmem [#allocation2], %s159
        %p161 = scmp.lt.s32.totalorder %s17, 1
        %s162 = scalar_select %p161, %s17, 1
        %s163 = smul.addr %s162, 4
        %s164 = scalar_lea.vmem %s0, %s163
        %v166 = vld [vmem:[%s1] sm:$0xf]
        %v167 = vld [vmem:[%s1 + $0x4] sm:$0xf]
        %v168 = vld [vmem:[%s1 + $0x8] sm:$0xf]
        %v169 = vld [vmem:[%s1 + $0xc] sm:$0xf]
        %v170 = vld [vmem:[%s164] sm:$0xf]
        %v171 = vld [vmem:[%s2] sm:$0xff]
        %v172 = vld [vmem:[%s2 + $0x8] sm:$0xff]
        %v173 = vld [vmem:[%s2 + $0x10] sm:$0xff]
        %v174 = vld [vmem:[%s2 + $0x18] sm:$0xff]
        %176 = vset.pattern.permute.xlu0 0
        %177 = vperm.xlu0 %176, %v171
        %v178 = vpop.permute.xlu0 %177
        %181 = vset.pattern.permute.xlu0 0
        %182 = vperm.xlu0 %181, %v172
        %v183 = vpop.permute.xlu0 %182
        %186 = vset.pattern.permute.xlu0 0
        %187 = vperm.xlu0 %186, %v173
        %v188 = vpop.permute.xlu0 %187
        %191 = vset.pattern.permute.xlu0 0
        %192 = vperm.xlu0 %191, %v174
        %v193 = vpop.permute.xlu0 %192
        %v199 = vunpack.c.l.b16 %v166
        %v200 = vunpack.c.l.b16 %v167
        %v201 = vunpack.c.l.b16 %v168
        %v202 = vunpack.c.l.b16 %v169
        %v203 = vpack.c.b16 %v200, %v199
        %v204 = vpack.c.b16 %v202, %v201
        %vm205 = vcmask 64512
        %v207 = vsel %vm205, %v203, 0
        %v210 = vsel %vm205, %v204, 0
        %vm212 = vcmask 1043456
        %v214 = vsel %vm212, %v170, 0
        %216 = vmatprep.subr.bf16.mxu0 0
        %217 = vmatpush1.bf16.msra.mxu0 0
        %218 = vmatprep.subr.bf16.mxu0 0
        %219 = vmatpush1.bf16.msra.mxu0 0
        %220 = vmatprep.subr.bf16.mxu0 0
        %221 = vmatpush1.bf16.msra.mxu0 0
        %222 = vmatprep.subr.bf16.mxu0 0
        %223 = vmatpush1.bf16.msra.mxu0 0
        %224 = vmatprep.subr.bf16.mxu0 0
        %225 = vmatpush1.bf16.msra.mxu0 0
        %226 = vmatprep.subr.bf16.mxu0 0
        %227 = vmatpush1.bf16.msra.mxu0 0
        %228 = vmatprep.subr.bf16.mxu0 0
        %229 = vmatpush1.bf16.msra.mxu0 0
        %230 = vmatprep.subr.bf16.mxu0 0
        %231 = vmatpush1.bf16.msra.mxu0 %v214
        %232 = vmatprep.subr.bf16.mxu0 0
        %233 = vmatpush2.bf16.msra.mxu0 0
        %234 = vmatprep.subr.bf16.mxu0 0
        %235 = vmatpush2.bf16.msra.mxu0 0
        %236 = vmatprep.subr.bf16.mxu0 0
        %237 = vmatpush2.bf16.msra.mxu0 0
        %238 = vmatprep.subr.bf16.mxu0 0
        %239 = vmatpush2.bf16.msra.mxu0 0
        %240 = vmatprep.subr.bf16.mxu0 0
        %241 = vmatpush2.bf16.msra.mxu0 0
        %242 = vmatprep.subr.bf16.mxu0 0
        %243 = vmatpush2.bf16.msra.mxu0 0
        %244 = vmatprep.subr.bf16.mxu0 0
        %245 = vmatpush2.bf16.msra.mxu0 0
        %246 = vmatprep.subr.bf16.mxu0 0
        %247 = vmatpush2.bf16.msra.mxu0 0
        %248 = vmatprep.mubr.bf16.mxu0 0
        %249 = vmatmul.mubr.bf16.gmra.mxu0 %v207
        %v250 = vpop.f32.mrf.mxu0
        %v251 = vadd.f32 %v178, %v250
        %v252 = vpop.f32.mrf.mxu0
        %v253 = vpop.f32.mrf.mxu0
        %v254 = vadd.f32 %v183, %v253
        %v255 = vpop.f32.mrf.mxu0
        %256 = vmatprep.mubr.bf16.mxu0 0
        %257 = vmatmul.mubr.bf16.gmra.mxu0 %v210
        %v258 = vpop.f32.mrf.mxu0
        %v259 = vadd.f32 %v188, %v258
        %v260 = vpop.f32.mrf.mxu0
        %v261 = vpop.f32.mrf.mxu0
        %v262 = vadd.f32 %v193, %v261
        %v263 = vpop.f32.mrf.mxu0
        %264 = vdwg.mxu0
        %v265 = vmax.f32 %v251, %v254
        %v266 = vmax.f32 %v259, %v262
        %v267 = vmax.f32 %v265, %v266
        %v268 = vrot.slane %v267, 4
        %v269 = vmax.f32 %v267, %v268
        %v270 = vrot.slane %v269, 2
        %v271 = vmax.f32 %v269, %v270
        %v272 = vrot.slane %v271, 1
        %v273 = vmax.f32 %v271, %v272
        %v274 = vmul.f32 %v273, 0.1
        %v275 = vmax.f32 %v273, %v274
        %276 = vst [vmem:[%s160] sm:$0x1] %v275
        %s277 = sand.u32 %s93, 1
        %s278 = scalar_lea.sflag [#allocation3], %s277
        %s279 = sand.u32 %s93, 1
        %s280 = scalar_lea.vmem [#allocation2], %s279
        // Predicated region
        $region33: #{tpu_custom_call.1} parent=31 // pred_check
          %p281 = pneg %p103
        $region34: #{tpu_custom_call.1} parent=31 // pred_check_branch
          %283 = sbr.rel (%p281) target = $region36
        $region35: #{tpu_custom_call.1} parent=31 // pred_region
          %s285 = ssub.s32 16, 16
          %286 = vsyncadd %s278, %s285
          %s287 = smul.addr %s17, 16
          %s288 = scalar_lea.hbm %s3, %s287
          %s290 = sshll.u32 %s280, 4
          %s291 = int_to_ptr.vmem [resolvable:$true] %s290
          %293 = dma.vmem_to_hbm [thread:$0]  %s291, 16, %s288, %s278
        $region36: #{tpu_custom_call.1} parent=31 // pred_fallthru
          _
      $region32: #{tpu_custom_call.1} parent=5 // pred_fallthru
        _
      %p294 = scmp.le.s32.totalorder 2, %s12
      // Predicated region
      $region37: #{tpu_custom_call.1} parent=5 // pred_check
        %p295 = pneg %p294
      $region38: #{tpu_custom_call.1} parent=5 // pred_check_branch
        %297 = sbr.rel (%p295) target = $region40
      $region39: #{tpu_custom_call.1} parent=5 // pred_region
        %s298 = ssub.s32 %s12, 2
        // Predicated region
        $region41: #{tpu_custom_call.1} parent=39 // pred_check
          %p299 = pneg %p109
        $region42: #{tpu_custom_call.1} parent=39 // pred_check_branch
          %301 = sbr.rel (%p299) target = $region44
        $region43: #{tpu_custom_call.1} parent=39 // pred_region
          %s302 = sand.u32 %s94, 1
          %s303 = scalar_lea.sflag [#allocation3], %s302
          %s304 = sand.u32 %s94, 1
          %s305 = scalar_lea.vmem [#allocation2], %s304
          %306 = dma.done %s303, 16
        $region44: #{tpu_custom_call.1} parent=39 // pred_fallthru
          _
      $region40: #{tpu_custom_call.1} parent=5 // pred_fallthru
        _
    $region6: #{tpu_custom_call.1} parent=1 // loop_footer
      %s16 = sadd.s32 1, %s12
    $region7: #{tpu_custom_call.1} parent=1 // loop_footer_branch
      %11 = sbr.rel target = $region3
    $region8: #{tpu_custom_call.1} parent=1 // loop_exit
      _
    %307 = vsyncpa [#allocation3], 1
    %s308 = scalar_lea.sflag [#allocation3], 1
    %309 = vsyncpa %s308, 1

</llo_original>
